<compile_context>
chip_gen: v7x
topology: tpu7x:2x2x1
jax: 0.10.0
libtpu: 0.0.40
codegen_flags: <defaults>
</compile_context>

<pallas_src>
import jax
import jax.numpy as jnp
from jax.experimental import pallas as pl
from jax.experimental.pallas import tpu as pltpu

_BN_EPS = 1e-5
_NORM_EPS_SQ = 1e-24   # F.normalize eps=1e-12, applied to the squared norm


# ---------------------------------------------------------------------------
# Fused kernel: encoder + projector + predictor (both views) + SimSiam loss
# ---------------------------------------------------------------------------
def _simsam_fused_kernel(
    x_ref,                                      # [2B, Fin] f32 (views stacked)
    we_ref, be_ref,                             # encoder Linear (w bf16, b f32)
    wp1_ref, gp_ref, bp_ref, wp2_ref, bp2_ref,  # projector _MLP
    wd1_ref, gd_ref, bd_ref, wd2_ref, bd2_ref,  # predictor _MLP
    loss_ref,                                   # (1, 1) f32 in SMEM
):
    two_b = x_ref.shape[0]
    nb = two_b // 2                             # per-view batch size

    def mxu(a_f32, w_ref):
        # bf16 operands on the MXU, f32 accumulation.
        return jnp.dot(a_f32.astype(jnp.bfloat16), w_ref[...],
                       preferred_element_type=jnp.float32)

    # ---- synthetic encoder: Linear -> ReLU --------------------------------
    h = jnp.maximum(mxu(x_ref[...], we_ref) + be_ref[...], 0.0)   # [2B, Henc]

    # ---- _MLP: Linear -> BatchNorm1d (per-view batch stats) -> ReLU -> Linear
    def mlp(a, w1_ref, g_ref, beta_ref, w2_ref, b2_ref):
        z = mxu(a, w1_ref)                                   # [2B, Hh] f32
        hh = z.shape[-1]
        # NOTE: the first Linear's bias is omitted on purpose: it is cancelled
        # exactly by the training-mode BatchNorm mean subtraction.
        z3 = z.reshape(2, nb, hh)                            # per-view stats
        mean = jnp.mean(z3, axis=1, keepdims=True)           # (2, 1, Hh)
        var = jnp.mean((z3 - mean) ** 2, axis=1, keepdims=True)  # biased, as torch BN
        scale = g_ref[...] * jax.lax.rsqrt(var + _BN_EPS)    # gamma folded into scale
        z3 = jnp.maximum((z3 - mean) * scale + beta_ref[...], 0.0)
        z = z3.reshape(two_b, hh)
        return mxu(z, w2_ref) + b2_ref[...]                  # [2B, out]

    proj = mlp(h, wp1_ref, gp_ref, bp_ref, wp2_ref, bp2_ref)      # [2B, P]
    pred = mlp(proj, wd1_ref, gd_ref, bd_ref, wd2_ref, bd2_ref)   # [2B, P]

    # ---- SimSiam loss: L2-normalize, cosine, 2 - 2*cos, batch mean ---------
    def l2_normalize(v):
        ssq = jnp.sum(v * v, axis=-1, keepdims=True)
        return v * jax.lax.rsqrt(jnp.maximum(ssq, _NORM_EPS_SQ))

    pn = l2_normalize(pred)    # online predictions
    tn = l2_normalize(proj)    # target projections (no-grad branch: same values)
    p1, p2 = pn[:nb], pn[nb:]
    t1, t2 = tn[:nb], tn[nb:]
    # (2 - 2*cos(p1, t2)) + (2 - 2*cos(p2, t1)), averaged over the batch
    per_sample = 4.0 - 2.0 * jnp.sum(p1 * t2 + p2 * t1, axis=-1, keepdims=True)
    loss_ref[0, 0] = jnp.sum(per_sample) / nb


# ---------------------------------------------------------------------------
# Wrapper
# ---------------------------------------------------------------------------
def _full_spec(shape):
    return pl.BlockSpec(shape, lambda: (0,) * len(shape))


def simsam_forward(x, enc_params, projector_params, predictor_params):
    B = x.shape[0]
    x_flat = x.reshape(B, -1).astype(jnp.float32)   # NCHW -> [B, C*H*W]

    # TODO(synk): deterministic surrogate for the random augmentation pipeline.
    x1 = x_flat
    x2 = 0.9 * x_flat + 0.1
    xv = jnp.concatenate([x1, x2], axis=0)          # [2B, Fin], both views stacked

    we, be = enc_params
    wp1, _bp1, gp, bp, wp2, bp2 = projector_params   # _bp1 cancelled by BN
    wd1, _bd1, gd, bd, wd2, bd2 = predictor_params   # _bd1 cancelled by BN

    operands = (xv, we, be, wp1, gp, bp, wp2, bp2, wd1, gd, bd, wd2, bd2)
    out = pl.pallas_call(
        _simsam_fused_kernel,
        out_shape=jax.ShapeDtypeStruct((1, 1), jnp.float32),
        in_specs=[_full_spec(a.shape) for a in operands],
        out_specs=pl.BlockSpec(memory_space=pltpu.MemorySpace.SMEM),
    )(*operands)
    return out[0, 0]


# ---------------------------------------------------------------------------
# Parameter init (deterministic, PyTorch-Linear-style uniform)
# ---------------------------------------------------------------------------
def _init_linear(key, fan_in, fan_out):
    bound = 1.0 / float(fan_in) ** 0.5
    kw, kb = jax.random.split(key)
    w = jax.random.uniform(kw, (fan_in, fan_out), jnp.float32, -bound, bound)
    b = jax.random.uniform(kb, (1, fan_out), jnp.float32, -bound, bound)
    return w.astype(jnp.bfloat16), b   # bf16 weights feed the MXU; bias stays f32


def _init_mlp(key, in_features, hidden_size, out_features):
    k1, k2 = jax.random.split(key)
    w1, b1 = _init_linear(k1, in_features, hidden_size)
    gamma = jnp.ones((1, hidden_size), jnp.float32)
    beta = jnp.zeros((1, hidden_size), jnp.float32)
    w2, b2 = _init_linear(k2, hidden_size, out_features)
    return (w1, b1, gamma, beta, w2, b2)


if __name__ == "__main__":
    key = jax.random.PRNGKey(0)
    kx, kenc, kproj, kpred = jax.random.split(key, 4)

    # Small but lane-aligned shapes (all feature dims are multiples of 128).
    B, C, H, W = 8, 1, 16, 16          # Fin = 256
    hidden_features = 128              # encoder output dim
    projection_size = 128
    projection_hidden_size = 256

    x = jax.random.normal(kx, (B, C, H, W), jnp.float32)

    enc_params = _init_linear(kenc, C * H * W, hidden_features)
    projector_params = _init_mlp(kproj, hidden_features, projection_hidden_size, projection_size)
    predictor_params = _init_mlp(kpred, projection_size, projection_hidden_size, projection_size)

    loss = jax.jit(simsam_forward)(x, enc_params, projector_params, predictor_params)
    jax.block_until_ready(loss)

    print("KERNEL_OK")
</pallas_src>

<mosaic_0001>
module attributes {stable_mosaic.version = 11 : i64} {
  func.func @_simsam_fused_kernel(%arg0: memref<16x256xf32, #tpu.memory_space<vmem>>, %arg1: memref<256x128xbf16, #tpu.memory_space<vmem>>, %arg2: memref<1x128xf32, #tpu.memory_space<vmem>>, %arg3: memref<128x256xbf16, #tpu.memory_space<vmem>>, %arg4: memref<1x256xf32, #tpu.memory_space<vmem>>, %arg5: memref<1x256xf32, #tpu.memory_space<vmem>>, %arg6: memref<256x128xbf16, #tpu.memory_space<vmem>>, %arg7: memref<1x128xf32, #tpu.memory_space<vmem>>, %arg8: memref<128x256xbf16, #tpu.memory_space<vmem>>, %arg9: memref<1x256xf32, #tpu.memory_space<vmem>>, %arg10: memref<1x256xf32, #tpu.memory_space<vmem>>, %arg11: memref<256x128xbf16, #tpu.memory_space<vmem>>, %arg12: memref<1x128xf32, #tpu.memory_space<vmem>>, %arg13: memref<1x1xf32, #tpu.memory_space<smem>>) attributes {dimension_semantics = [], scalar_prefetch = 0 : i64, scratch_operands = 0 : i64, tpu.core_type = #tpu.core_type<tc>} {
    %c0 = arith.constant 0 : index
    %c0_0 = arith.constant 0 : index
    %0 = vector.load %arg0[%c0, %c0_0] : memref<16x256xf32, #tpu.memory_space<vmem>>, vector<16x256xf32>
    %1 = arith.truncf %0 : vector<16x256xf32> to vector<16x256xbf16>
    %c0_1 = arith.constant 0 : index
    %c0_2 = arith.constant 0 : index
    %2 = vector.load %arg1[%c0_1, %c0_2] : memref<256x128xbf16, #tpu.memory_space<vmem>>, vector<256x128xbf16>
    %cst = arith.constant dense<0.000000e+00> : vector<16x128xf32>
    %3 = tpu.matmul %1, %2, %cst {dimension_numbers = #tpu.dot_dimension_numbers<[1], [0], [0], [1], [0, 0, 1, 1], [], []>} : vector<16x256xbf16>, vector<256x128xbf16>, vector<16x128xf32> -> vector<16x128xf32>
    %c0_3 = arith.constant 0 : index
    %c0_4 = arith.constant 0 : index
    %4 = vector.load %arg2[%c0_3, %c0_4] : memref<1x128xf32, #tpu.memory_space<vmem>>, vector<1x128xf32>
    %5 = vector.broadcast %4 : vector<1x128xf32> to vector<16x128xf32>
    %6 = arith.addf %3, %5 : vector<16x128xf32>
    %cst_5 = arith.constant 0.000000e+00 : f32
    %7 = vector.broadcast %cst_5 : f32 to vector<16x128xf32>
    %8 = arith.maximumf %6, %7 : vector<16x128xf32>
    %9 = arith.truncf %8 : vector<16x128xf32> to vector<16x128xbf16>
    %c0_6 = arith.constant 0 : index
    %c0_7 = arith.constant 0 : index
    %10 = vector.load %arg3[%c0_6, %c0_7] : memref<128x256xbf16, #tpu.memory_space<vmem>>, vector<128x256xbf16>
    %cst_8 = arith.constant dense<0.000000e+00> : vector<16x256xf32>
    %11 = tpu.matmul %9, %10, %cst_8 {dimension_numbers = #tpu.dot_dimension_numbers<[1], [0], [0], [1], [0, 0, 1, 1], [], []>} : vector<16x128xbf16>, vector<128x256xbf16>, vector<16x256xf32> -> vector<16x256xf32>
    %12 = vector.shape_cast %11 : vector<16x256xf32> to vector<2x8x256xf32>
    %cst_9 = arith.constant dense<0.000000e+00> : vector<2x256xf32>
    %13 = vector.multi_reduction <add>, %12, %cst_9 [1] : vector<2x8x256xf32> to vector<2x256xf32>
    %14 = vector.shape_cast %13 : vector<2x256xf32> to vector<2x1x256xf32>
    %cst_10 = arith.constant 8.000000e+00 : f32
    %15 = vector.broadcast %cst_10 : f32 to vector<2x1x256xf32>
    %16 = arith.divf %14, %15 : vector<2x1x256xf32>
    %17 = vector.broadcast %16 : vector<2x1x256xf32> to vector<2x8x256xf32>
    %18 = arith.subf %12, %17 : vector<2x8x256xf32>
    %19 = arith.mulf %18, %18 : vector<2x8x256xf32>
    %cst_11 = arith.constant dense<0.000000e+00> : vector<2x256xf32>
    %20 = vector.multi_reduction <add>, %19, %cst_11 [1] : vector<2x8x256xf32> to vector<2x256xf32>
    %21 = vector.shape_cast %20 : vector<2x256xf32> to vector<2x1x256xf32>
    %cst_12 = arith.constant 8.000000e+00 : f32
    %22 = vector.broadcast %cst_12 : f32 to vector<2x1x256xf32>
    %23 = arith.divf %21, %22 : vector<2x1x256xf32>
    %c0_13 = arith.constant 0 : index
    %c0_14 = arith.constant 0 : index
    %24 = vector.load %arg4[%c0_13, %c0_14] : memref<1x256xf32, #tpu.memory_space<vmem>>, vector<1x256xf32>
    %cst_15 = arith.constant 9.99999974E-6 : f32
    %25 = vector.broadcast %cst_15 : f32 to vector<2x1x256xf32>
    %26 = arith.addf %23, %25 : vector<2x1x256xf32>
    %27 = math.rsqrt %26 : vector<2x1x256xf32>
    %28 = vector.shape_cast %24 : vector<1x256xf32> to vector<1x1x256xf32>
    %29 = vector.broadcast %28 : vector<1x1x256xf32> to vector<2x1x256xf32>
    %30 = arith.mulf %29, %27 : vector<2x1x256xf32>
    %31 = vector.broadcast %16 : vector<2x1x256xf32> to vector<2x8x256xf32>
    %32 = arith.subf %12, %31 : vector<2x8x256xf32>
    %33 = vector.broadcast %30 : vector<2x1x256xf32> to vector<2x8x256xf32>
    %34 = arith.mulf %32, %33 : vector<2x8x256xf32>
    %c0_16 = arith.constant 0 : index
    %c0_17 = arith.constant 0 : index
    %35 = vector.load %arg5[%c0_16, %c0_17] : memref<1x256xf32, #tpu.memory_space<vmem>>, vector<1x256xf32>
    %36 = vector.shape_cast %35 : vector<1x256xf32> to vector<1x1x256xf32>
    %37 = vector.broadcast %36 : vector<1x1x256xf32> to vector<2x8x256xf32>
    %38 = arith.addf %34, %37 : vector<2x8x256xf32>
    %cst_18 = arith.constant 0.000000e+00 : f32
    %39 = vector.broadcast %cst_18 : f32 to vector<2x8x256xf32>
    %40 = arith.maximumf %38, %39 : vector<2x8x256xf32>
    %41 = vector.shape_cast %40 : vector<2x8x256xf32> to vector<16x256xf32>
    %42 = arith.truncf %41 : vector<16x256xf32> to vector<16x256xbf16>
    %c0_19 = arith.constant 0 : index
    %c0_20 = arith.constant 0 : index
    %43 = vector.load %arg6[%c0_19, %c0_20] : memref<256x128xbf16, #tpu.memory_space<vmem>>, vector<256x128xbf16>
    %cst_21 = arith.constant dense<0.000000e+00> : vector<16x128xf32>
    %44 = tpu.matmul %42, %43, %cst_21 {dimension_numbers = #tpu.dot_dimension_numbers<[1], [0], [0], [1], [0, 0, 1, 1], [], []>} : vector<16x256xbf16>, vector<256x128xbf16>, vector<16x128xf32> -> vector<16x128xf32>
    %c0_22 = arith.constant 0 : index
    %c0_23 = arith.constant 0 : index
    %45 = vector.load %arg7[%c0_22, %c0_23] : memref<1x128xf32, #tpu.memory_space<vmem>>, vector<1x128xf32>
    %46 = vector.broadcast %45 : vector<1x128xf32> to vector<16x128xf32>
    %47 = arith.addf %44, %46 : vector<16x128xf32>
    %48 = arith.truncf %47 : vector<16x128xf32> to vector<16x128xbf16>
    %c0_24 = arith.constant 0 : index
    %c0_25 = arith.constant 0 : index
    %49 = vector.load %arg8[%c0_24, %c0_25] : memref<128x256xbf16, #tpu.memory_space<vmem>>, vector<128x256xbf16>
    %cst_26 = arith.constant dense<0.000000e+00> : vector<16x256xf32>
    %50 = tpu.matmul %48, %49, %cst_26 {dimension_numbers = #tpu.dot_dimension_numbers<[1], [0], [0], [1], [0, 0, 1, 1], [], []>} : vector<16x128xbf16>, vector<128x256xbf16>, vector<16x256xf32> -> vector<16x256xf32>
    %51 = vector.shape_cast %50 : vector<16x256xf32> to vector<2x8x256xf32>
    %cst_27 = arith.constant dense<0.000000e+00> : vector<2x256xf32>
    %52 = vector.multi_reduction <add>, %51, %cst_27 [1] : vector<2x8x256xf32> to vector<2x256xf32>
    %53 = vector.shape_cast %52 : vector<2x256xf32> to vector<2x1x256xf32>
    %cst_28 = arith.constant 8.000000e+00 : f32
    %54 = vector.broadcast %cst_28 : f32 to vector<2x1x256xf32>
    %55 = arith.divf %53, %54 : vector<2x1x256xf32>
    %56 = vector.broadcast %55 : vector<2x1x256xf32> to vector<2x8x256xf32>
    %57 = arith.subf %51, %56 : vector<2x8x256xf32>
    %58 = arith.mulf %57, %57 : vector<2x8x256xf32>
    %cst_29 = arith.constant dense<0.000000e+00> : vector<2x256xf32>
    %59 = vector.multi_reduction <add>, %58, %cst_29 [1] : vector<2x8x256xf32> to vector<2x256xf32>
    %60 = vector.shape_cast %59 : vector<2x256xf32> to vector<2x1x256xf32>
    %cst_30 = arith.constant 8.000000e+00 : f32
    %61 = vector.broadcast %cst_30 : f32 to vector<2x1x256xf32>
    %62 = arith.divf %60, %61 : vector<2x1x256xf32>
    %c0_31 = arith.constant 0 : index
    %c0_32 = arith.constant 0 : index
    %63 = vector.load %arg9[%c0_31, %c0_32] : memref<1x256xf32, #tpu.memory_space<vmem>>, vector<1x256xf32>
    %cst_33 = arith.constant 9.99999974E-6 : f32
    %64 = vector.broadcast %cst_33 : f32 to vector<2x1x256xf32>
    %65 = arith.addf %62, %64 : vector<2x1x256xf32>
    %66 = math.rsqrt %65 : vector<2x1x256xf32>
    %67 = vector.shape_cast %63 : vector<1x256xf32> to vector<1x1x256xf32>
    %68 = vector.broadcast %67 : vector<1x1x256xf32> to vector<2x1x256xf32>
    %69 = arith.mulf %68, %66 : vector<2x1x256xf32>
    %70 = vector.broadcast %55 : vector<2x1x256xf32> to vector<2x8x256xf32>
    %71 = arith.subf %51, %70 : vector<2x8x256xf32>
    %72 = vector.broadcast %69 : vector<2x1x256xf32> to vector<2x8x256xf32>
    %73 = arith.mulf %71, %72 : vector<2x8x256xf32>
    %c0_34 = arith.constant 0 : index
    %c0_35 = arith.constant 0 : index
    %74 = vector.load %arg10[%c0_34, %c0_35] : memref<1x256xf32, #tpu.memory_space<vmem>>, vector<1x256xf32>
    %75 = vector.shape_cast %74 : vector<1x256xf32> to vector<1x1x256xf32>
    %76 = vector.broadcast %75 : vector<1x1x256xf32> to vector<2x8x256xf32>
    %77 = arith.addf %73, %76 : vector<2x8x256xf32>
    %cst_36 = arith.constant 0.000000e+00 : f32
    %78 = vector.broadcast %cst_36 : f32 to vector<2x8x256xf32>
    %79 = arith.maximumf %77, %78 : vector<2x8x256xf32>
    %80 = vector.shape_cast %79 : vector<2x8x256xf32> to vector<16x256xf32>
    %81 = arith.truncf %80 : vector<16x256xf32> to vector<16x256xbf16>
    %c0_37 = arith.constant 0 : index
    %c0_38 = arith.constant 0 : index
    %82 = vector.load %arg11[%c0_37, %c0_38] : memref<256x128xbf16, #tpu.memory_space<vmem>>, vector<256x128xbf16>
    %cst_39 = arith.constant dense<0.000000e+00> : vector<16x128xf32>
    %83 = tpu.matmul %81, %82, %cst_39 {dimension_numbers = #tpu.dot_dimension_numbers<[1], [0], [0], [1], [0, 0, 1, 1], [], []>} : vector<16x256xbf16>, vector<256x128xbf16>, vector<16x128xf32> -> vector<16x128xf32>
    %c0_40 = arith.constant 0 : index
    %c0_41 = arith.constant 0 : index
    %84 = vector.load %arg12[%c0_40, %c0_41] : memref<1x128xf32, #tpu.memory_space<vmem>>, vector<1x128xf32>
    %85 = vector.broadcast %84 : vector<1x128xf32> to vector<16x128xf32>
    %86 = arith.addf %83, %85 : vector<16x128xf32>
    %87 = arith.mulf %86, %86 : vector<16x128xf32>
    %cst_42 = arith.constant dense<0.000000e+00> : vector<16xf32>
    %88 = vector.multi_reduction <add>, %87, %cst_42 [1] : vector<16x128xf32> to vector<16xf32>
    %89 = vector.shape_cast %88 : vector<16xf32> to vector<16x1xf32>
    %cst_43 = arith.constant 1.000000e-24 : f32
    %90 = vector.broadcast %cst_43 : f32 to vector<16x1xf32>
    %91 = arith.maximumf %89, %90 : vector<16x1xf32>
    %92 = math.rsqrt %91 : vector<16x1xf32>
    %93 = vector.broadcast %92 : vector<16x1xf32> to vector<16x128xf32>
    %94 = arith.mulf %86, %93 : vector<16x128xf32>
    %95 = arith.mulf %47, %47 : vector<16x128xf32>
    %cst_44 = arith.constant dense<0.000000e+00> : vector<16xf32>
    %96 = vector.multi_reduction <add>, %95, %cst_44 [1] : vector<16x128xf32> to vector<16xf32>
    %97 = vector.shape_cast %96 : vector<16xf32> to vector<16x1xf32>
    %cst_45 = arith.constant 1.000000e-24 : f32
    %98 = vector.broadcast %cst_45 : f32 to vector<16x1xf32>
    %99 = arith.maximumf %97, %98 : vector<16x1xf32>
    %100 = math.rsqrt %99 : vector<16x1xf32>
    %101 = vector.broadcast %100 : vector<16x1xf32> to vector<16x128xf32>
    %102 = arith.mulf %47, %101 : vector<16x128xf32>
    %103 = vector.extract_strided_slice %94 {offsets = [0, 0], sizes = [8, 128], strides = [1, 1]} : vector<16x128xf32> to vector<8x128xf32>
    %104 = vector.extract_strided_slice %94 {offsets = [8, 0], sizes = [8, 128], strides = [1, 1]} : vector<16x128xf32> to vector<8x128xf32>
    %105 = vector.extract_strided_slice %102 {offsets = [0, 0], sizes = [8, 128], strides = [1, 1]} : vector<16x128xf32> to vector<8x128xf32>
    %106 = vector.extract_strided_slice %102 {offsets = [8, 0], sizes = [8, 128], strides = [1, 1]} : vector<16x128xf32> to vector<8x128xf32>
    %107 = arith.mulf %103, %106 : vector<8x128xf32>
    %108 = arith.mulf %104, %105 : vector<8x128xf32>
    %109 = arith.addf %107, %108 : vector<8x128xf32>
    %cst_46 = arith.constant dense<0.000000e+00> : vector<8xf32>
    %110 = vector.multi_reduction <add>, %109, %cst_46 [1] : vector<8x128xf32> to vector<8xf32>
    %111 = vector.shape_cast %110 : vector<8xf32> to vector<8x1xf32>
    %cst_47 = arith.constant 2.000000e+00 : f32
    %112 = vector.broadcast %cst_47 : f32 to vector<8x1xf32>
    %113 = arith.mulf %112, %111 : vector<8x1xf32>
    %cst_48 = arith.constant 4.000000e+00 : f32
    %114 = vector.broadcast %cst_48 : f32 to vector<8x1xf32>
    %115 = arith.subf %114, %113 : vector<8x1xf32>
    %116 = vector.shape_cast %115 : vector<8x1xf32> to vector<1x8x1xf32>
    %cst_49 = arith.constant dense<0.000000e+00> : vector<1xf32>
    %117 = vector.multi_reduction <add>, %116, %cst_49 [1, 2] : vector<1x8x1xf32> to vector<1xf32>
    %118 = vector.shape_cast %117 : vector<1xf32> to vector<1x1x1xf32>
    %119 = vector.extract %118[0, 0, 0] : f32 from vector<1x1x1xf32>
    %cst_50 = arith.constant 8.000000e+00 : f32
    %120 = arith.divf %119, %cst_50 : f32
    %c0_51 = arith.constant 0 : index
    %c0_52 = arith.constant 0 : index
    %121 = memref.load %arg13[%c0_51, %c0_52] : memref<1x1xf32, #tpu.memory_space<smem>>
    memref.store %120, %arg13[%c0_51, %c0_52] : memref<1x1xf32, #tpu.memory_space<smem>>
    return
  }
}

</mosaic_0001>

<llo_original>
// kernel: simsam_forward.1
$region0: #{simsam_forward.1}
  #allocation0 [shape = 'u32[]', space=smem, size = 0x4, offset = 0x4, fixed_abs, tag = 'smem constant byte address 0x4 - core index']
  #allocation1 [shape = 'u32[144,128]{1,0:T(1,128)}', space=vmem, size = 0x12000, scoped, tag = 'internal scratch']
  %s0 = inlined_call_operand.vmem [shape: f32[16,256], index: 0, kind: input, shape index: {}]
  %s1 = inlined_call_operand.vmem [shape: bf16[256,128], index: 1, kind: input, shape index: {}]
  %s2 = inlined_call_operand.hbm [shape: f32[1,128], index: 2, kind: input, shape index: {}]
  %s3 = inlined_call_operand.hbm [shape: bf16[128,256], index: 3, kind: input, shape index: {}]
  %s4 = inlined_call_operand.vmem [shape: f32[1,256], index: 4, kind: input, shape index: {}]
  %s5 = inlined_call_operand.hbm [shape: f32[1,256], index: 5, kind: input, shape index: {}]
  %s6 = inlined_call_operand.vmem [shape: bf16[256,128], index: 6, kind: input, shape index: {}]
  %s7 = inlined_call_operand.vmem [shape: f32[1,128], index: 7, kind: input, shape index: {}]
  %s8 = inlined_call_operand.hbm [shape: bf16[128,256], index: 8, kind: input, shape index: {}]
  %s9 = inlined_call_operand.vmem [shape: f32[1,256], index: 9, kind: input, shape index: {}]
  %s10 = inlined_call_operand.vmem [shape: f32[1,256], index: 10, kind: input, shape index: {}]
  %s11 = inlined_call_operand.hbm [shape: bf16[256,128], index: 11, kind: input, shape index: {}]
  %s12 = inlined_call_operand.vmem [shape: f32[1,128], index: 12, kind: input, shape index: {}]
  %s13 = inlined_call_operand.hbm [shape: f32[1,1], index: 13, kind: output, shape index: {}]
  %s14 = sld [smem:[#allocation0]]
  $region82: #{simsam_forward.1} parent=0
    _
  %s16 = ssub.s32 1, %s14
  %s17 = scalar_select 0, %s16, %s14
  $region1: #{simsam_forward.1} parent=0
    #allocation2 [shape = 'u8[512]{0}', space=vmem, size = 0x400, scoped, tag = 'input window, operand 2, single buffered']
    #allocation3 [shape = 's32[1]{0}', space=sflag, size = 0x4, scoped, tag = 'scoped memory for simsam_forward.1']
    #allocation4 [shape = 's32[1]{0}', space=sflag, size = 0x4, scoped, tag = 'scoped memory for simsam_forward.1']
    #allocation5 [shape = 'u8[65536]{0}', space=vmem, size = 0x10000, scoped, tag = 'input window, operand 3, single buffered']
    #allocation6 [shape = 's32[1]{0}', space=sflag, size = 0x4, scoped, tag = 'scoped memory for simsam_forward.1']
    #allocation7 [shape = 'u8[1024]{0}', space=vmem, size = 0x400, scoped, tag = 'input window, operand 5, single buffered']
    #allocation8 [shape = 'u8[65536]{0}', space=vmem, size = 0x10000, scoped, tag = 'input window, operand 8, single buffered']
    #allocation9 [shape = 's32[1]{0}', space=sflag, size = 0x4, scoped, tag = 'scoped memory for simsam_forward.1']
    #allocation10 [shape = 'u8[65536]{0}', space=vmem, size = 0x10000, scoped, tag = 'input window, operand 11, single buffered']
    #allocation11 [shape = 'u8[512]{0}', space=smem, size = 0x200, scoped, tag = 'output window, operand 0, single buffered']
    %18 = vsyncpa [#allocation3], 0
    %19 = vsyncpa [#allocation6], 0
    %20 = vsyncpa [#allocation9], 0
    %21 = vsyncpa [#allocation4], 0
    // Predicated region
    $region2: #{simsam_forward.1} parent=1 // pred_check
      _
    $region3: #{simsam_forward.1} parent=1 // pred_check_branch
      %23 = sbr.rel (0) target = $region5
    $region4: #{simsam_forward.1} parent=1 // pred_region
      _
    $region5: #{simsam_forward.1} parent=1 // pred_fallthru
      _
    // Predicated region
    $region6: #{simsam_forward.1} parent=1 // pred_check
      _
    $region7: #{simsam_forward.1} parent=1 // pred_check_branch
      %25 = sbr.rel (0) target = $region9
    $region8: #{simsam_forward.1} parent=1 // pred_region
      _
    $region9: #{simsam_forward.1} parent=1 // pred_fallthru
      _
    // Predicated region
    $region10: #{simsam_forward.1} parent=1 // pred_check
      _
    $region11: #{simsam_forward.1} parent=1 // pred_check_branch
      %27 = sbr.rel (0) target = $region13
    $region12: #{simsam_forward.1} parent=1 // pred_region
      %s29 = ssub.s32 16, 16
      %30 = vsyncadd [#allocation3], %s29
      %s32 = sshll.u32 [#allocation2], 4
      %s33 = int_to_ptr.vmem [resolvable:$true] %s32
      %35 = dma.hbm_to_vmem [thread:$0]  %s2, 16, %s33, [#allocation3]
    $region13: #{simsam_forward.1} parent=1 // pred_fallthru
      _
    // Predicated region
    $region14: #{simsam_forward.1} parent=1 // pred_check
      _
    $region15: #{simsam_forward.1} parent=1 // pred_check_branch
      %37 = sbr.rel (0) target = $region17
    $region16: #{simsam_forward.1} parent=1 // pred_region
      %s39 = ssub.s32 2048, 2048
      %40 = vsyncadd [#allocation6], %s39
      %s41 = sshll.u32 [#allocation5], 4
      %s42 = int_to_ptr.vmem [resolvable:$true] %s41
      %47 = dma.hbm_to_vmem [thread:$0]  %s3, 2048, %s42, [#allocation6], 128, 128, 8
    $region17: #{simsam_forward.1} parent=1 // pred_fallthru
      _
    // Predicated region
    $region18: #{simsam_forward.1} parent=1 // pred_check
      _
    $region19: #{simsam_forward.1} parent=1 // pred_check_branch
      %49 = sbr.rel (0) target = $region21
    $region20: #{simsam_forward.1} parent=1 // pred_region
      _
    $region21: #{simsam_forward.1} parent=1 // pred_fallthru
      _
    // Predicated region
    $region22: #{simsam_forward.1} parent=1 // pred_check
      _
    $region23: #{simsam_forward.1} parent=1 // pred_check_branch
      %51 = sbr.rel (0) target = $region25
    $region24: #{simsam_forward.1} parent=1 // pred_region
      %s53 = ssub.s32 32, 32
      %54 = vsyncadd [#allocation6], %s53
      %s56 = sshll.u32 [#allocation7], 4
      %s57 = int_to_ptr.vmem [resolvable:$true] %s56
      %59 = dma.hbm_to_vmem [thread:$0]  %s5, 32, %s57, [#allocation6]
    $region25: #{simsam_forward.1} parent=1 // pred_fallthru
      _
    // Predicated region
    $region26: #{simsam_forward.1} parent=1 // pred_check
      _
    $region27: #{simsam_forward.1} parent=1 // pred_check_branch
      %61 = sbr.rel (0) target = $region29
    $region28: #{simsam_forward.1} parent=1 // pred_region
      _
    $region29: #{simsam_forward.1} parent=1 // pred_fallthru
      _
    // Predicated region
    $region30: #{simsam_forward.1} parent=1 // pred_check
      _
    $region31: #{simsam_forward.1} parent=1 // pred_check_branch
      %63 = sbr.rel (0) target = $region33
    $region32: #{simsam_forward.1} parent=1 // pred_region
      _
    $region33: #{simsam_forward.1} parent=1 // pred_fallthru
      _
    // Predicated region
    $region34: #{simsam_forward.1} parent=1 // pred_check
      _
    $region35: #{simsam_forward.1} parent=1 // pred_check_branch
      %65 = sbr.rel (0) target = $region37
    $region36: #{simsam_forward.1} parent=1 // pred_region
      %s67 = ssub.s32 2048, 2048
      %68 = vsyncadd [#allocation9], %s67
      %s69 = sshll.u32 [#allocation8], 4
      %s70 = int_to_ptr.vmem [resolvable:$true] %s69
      %75 = dma.hbm_to_vmem [thread:$0]  %s8, 2048, %s70, [#allocation9], 128, 128, 8
    $region37: #{simsam_forward.1} parent=1 // pred_fallthru
      _
    // Predicated region
    $region38: #{simsam_forward.1} parent=1 // pred_check
      _
    $region39: #{simsam_forward.1} parent=1 // pred_check_branch
      %77 = sbr.rel (0) target = $region41
    $region40: #{simsam_forward.1} parent=1 // pred_region
      _
    $region41: #{simsam_forward.1} parent=1 // pred_fallthru
      _
    // Predicated region
    $region42: #{simsam_forward.1} parent=1 // pred_check
      _
    $region43: #{simsam_forward.1} parent=1 // pred_check_branch
      %79 = sbr.rel (0) target = $region45
    $region44: #{simsam_forward.1} parent=1 // pred_region
      _
    $region45: #{simsam_forward.1} parent=1 // pred_fallthru
      _
    // Predicated region
    $region46: #{simsam_forward.1} parent=1 // pred_check
      _
    $region47: #{simsam_forward.1} parent=1 // pred_check_branch
      %81 = sbr.rel (0) target = $region49
    $region48: #{simsam_forward.1} parent=1 // pred_region
      %s83 = ssub.s32 2048, 2048
      %84 = vsyncadd [#allocation9], %s83
      %s85 = sshll.u32 [#allocation10], 4
      %s86 = int_to_ptr.vmem [resolvable:$true] %s85
      %91 = dma.hbm_to_vmem [thread:$0]  %s11, 2048, %s86, [#allocation9], 64, 64, 4
    $region49: #{simsam_forward.1} parent=1 // pred_fallthru
      _
    // Predicated region
    $region50: #{simsam_forward.1} parent=1 // pred_check
      _
    $region51: #{simsam_forward.1} parent=1 // pred_check_branch
      %93 = sbr.rel (0) target = $region53
    $region52: #{simsam_forward.1} parent=1 // pred_region
      _
    $region53: #{simsam_forward.1} parent=1 // pred_fallthru
      _
    // Predicated region
    $region54: #{simsam_forward.1} parent=1 // pred_check
      _
    $region55: #{simsam_forward.1} parent=1 // pred_check_branch
      %95 = sbr.rel (0) target = $region57
    $region56: #{simsam_forward.1} parent=1 // pred_region
      %96 = dma.done [#allocation3], 16
    $region57: #{simsam_forward.1} parent=1 // pred_fallthru
      _
    // Predicated region
    $region58: #{simsam_forward.1} parent=1 // pred_check
      _
    $region59: #{simsam_forward.1} parent=1 // pred_check_branch
      %98 = sbr.rel (0) target = $region61
    $region60: #{simsam_forward.1} parent=1 // pred_region
      %99 = dma.done [#allocation6], 2048
    $region61: #{simsam_forward.1} parent=1 // pred_fallthru
      _
    // Predicated region
    $region62: #{simsam_forward.1} parent=1 // pred_check
      _
    $region63: #{simsam_forward.1} parent=1 // pred_check_branch
      %101 = sbr.rel (0) target = $region65
    $region64: #{simsam_forward.1} parent=1 // pred_region
      %102 = dma.done [#allocation6], 32
    $region65: #{simsam_forward.1} parent=1 // pred_fallthru
      _
    // Predicated region
    $region66: #{simsam_forward.1} parent=1 // pred_check
      _
    $region67: #{simsam_forward.1} parent=1 // pred_check_branch
      %104 = sbr.rel (0) target = $region69
    $region68: #{simsam_forward.1} parent=1 // pred_region
      %105 = dma.done [#allocation9], 2048
    $region69: #{simsam_forward.1} parent=1 // pred_fallthru
      _
    // Predicated region
    $region70: #{simsam_forward.1} parent=1 // pred_check
      _
    $region71: #{simsam_forward.1} parent=1 // pred_check_branch
      %107 = sbr.rel (0) target = $region73
    $region72: #{simsam_forward.1} parent=1 // pred_region
      %108 = dma.done [#allocation9], 2048
    $region73: #{simsam_forward.1} parent=1 // pred_fallthru
      _
    %v110 = vld [vmem:[%s0] sm:$0xff]
    %v111 = vld [vmem:[%s0 + $0x8] sm:$0xff]
    %v112 = vld [vmem:[%s0 + $0x10] sm:$0xff]
    %v113 = vld [vmem:[%s0 + $0x18] sm:$0xff]
    %v114 = vpack.c.bf16 %v112, %v110
    %v115 = vpack.c.bf16 %v113, %v111
    %v116 = vld [vmem:[%s1] sm:$0xf]
    %v117 = vld [vmem:[%s1 + $0x4] sm:$0xf]
    %v118 = vld [vmem:[%s1 + $0x8] sm:$0xf]
    %v119 = vld [vmem:[%s1 + $0xc] sm:$0xf]
    %v120 = vld [vmem:[%s1 + $0x10] sm:$0xf]
    %v121 = vld [vmem:[%s1 + $0x14] sm:$0xf]
    %v122 = vld [vmem:[%s1 + $0x18] sm:$0xf]
    %v123 = vld [vmem:[%s1 + $0x1c] sm:$0xf]
    %v124 = vld [vmem:[%s1 + $0x20] sm:$0xf]
    %v125 = vld [vmem:[%s1 + $0x24] sm:$0xf]
    %v126 = vld [vmem:[%s1 + $0x28] sm:$0xf]
    %v127 = vld [vmem:[%s1 + $0x2c] sm:$0xf]
    %v128 = vld [vmem:[%s1 + $0x30] sm:$0xf]
    %v129 = vld [vmem:[%s1 + $0x34] sm:$0xf]
    %v130 = vld [vmem:[%s1 + $0x38] sm:$0xf]
    %v131 = vld [vmem:[%s1 + $0x3c] sm:$0xf]
    %v132 = vld [vmem:[%s1 + $0x40] sm:$0xf]
    %v133 = vld [vmem:[%s1 + $0x44] sm:$0xf]
    %v134 = vld [vmem:[%s1 + $0x48] sm:$0xf]
    %v135 = vld [vmem:[%s1 + $0x4c] sm:$0xf]
    %v136 = vld [vmem:[%s1 + $0x50] sm:$0xf]
    %v137 = vld [vmem:[%s1 + $0x54] sm:$0xf]
    %v138 = vld [vmem:[%s1 + $0x58] sm:$0xf]
    %v139 = vld [vmem:[%s1 + $0x5c] sm:$0xf]
    %v140 = vld [vmem:[%s1 + $0x60] sm:$0xf]
    %v141 = vld [vmem:[%s1 + $0x64] sm:$0xf]
    %v142 = vld [vmem:[%s1 + $0x68] sm:$0xf]
    %v143 = vld [vmem:[%s1 + $0x6c] sm:$0xf]
    %v144 = vld [vmem:[%s1 + $0x70] sm:$0xf]
    %v145 = vld [vmem:[%s1 + $0x74] sm:$0xf]
    %v146 = vld [vmem:[%s1 + $0x78] sm:$0xf]
    %v147 = vld [vmem:[%s1 + $0x7c] sm:$0xf]
    %v148 = vld [vmem:[#allocation2] sm:$0x1]
    %v150 = vlaneseq
    %v151 = vshrl.u32 %v150, 7
    %v152 = vsub.s32 0, %v151
    %v153 = vrot.slane %v148, %v152
    %v187 = vunpack.c.l.b16 %v116
    %v188 = vunpack.c.l.b16 %v117
    %v189 = vunpack.c.l.b16 %v118
    %v190 = vunpack.c.l.b16 %v119
    %v191 = vunpack.c.l.b16 %v120
    %v192 = vunpack.c.l.b16 %v121
    %v193 = vunpack.c.l.b16 %v122
    %v194 = vunpack.c.l.b16 %v123
    %v195 = vunpack.c.l.b16 %v124
    %v196 = vunpack.c.l.b16 %v125
    %v197 = vunpack.c.l.b16 %v126
    %v198 = vunpack.c.l.b16 %v127
    %v199 = vunpack.c.l.b16 %v128
    %v200 = vunpack.c.l.b16 %v129
    %v201 = vunpack.c.l.b16 %v130
    %v202 = vunpack.c.l.b16 %v131
    %v203 = vunpack.c.l.b16 %v132
    %v204 = vunpack.c.l.b16 %v133
    %v205 = vunpack.c.l.b16 %v134
    %v206 = vunpack.c.l.b16 %v135
    %v207 = vunpack.c.l.b16 %v136
    %v208 = vunpack.c.l.b16 %v137
    %v209 = vunpack.c.l.b16 %v138
    %v210 = vunpack.c.l.b16 %v139
    %v211 = vunpack.c.l.b16 %v140
    %v212 = vunpack.c.l.b16 %v141
    %v213 = vunpack.c.l.b16 %v142
    %v214 = vunpack.c.l.b16 %v143
    %v215 = vunpack.c.l.b16 %v144
    %v216 = vunpack.c.l.b16 %v145
    %v217 = vunpack.c.l.b16 %v146
    %v218 = vunpack.c.l.b16 %v147
    %v219 = vpack.c.b16 %v188, %v187
    %v220 = vpack.c.b16 %v190, %v189
    %v221 = vpack.c.b16 %v192, %v191
    %v222 = vpack.c.b16 %v194, %v193
    %v223 = vpack.c.b16 %v196, %v195
    %v224 = vpack.c.b16 %v198, %v197
    %v225 = vpack.c.b16 %v200, %v199
    %v226 = vpack.c.b16 %v202, %v201
    %v227 = vpack.c.b16 %v204, %v203
    %v228 = vpack.c.b16 %v206, %v205
    %v229 = vpack.c.b16 %v208, %v207
    %v230 = vpack.c.b16 %v210, %v209
    %v231 = vpack.c.b16 %v212, %v211
    %v232 = vpack.c.b16 %v214, %v213
    %v233 = vpack.c.b16 %v216, %v215
    %v234 = vpack.c.b16 %v218, %v217
    %251 = vmatprep.subr.bf16.mxu0 0
    %252 = vmatpush1.bf16.msra.mxu0 %v219
    %253 = vmatprep.subr.bf16.mxu0 0
    %254 = vmatpush1.bf16.msra.mxu0 %v220
    %255 = vmatprep.subr.bf16.mxu0 0
    %256 = vmatpush1.bf16.msra.mxu0 %v221
    %257 = vmatprep.subr.bf16.mxu0 0
    %258 = vmatpush1.bf16.msra.mxu0 %v222
    %259 = vmatprep.subr.bf16.mxu0 0
    %260 = vmatpush1.bf16.msra.mxu0 %v223
    %261 = vmatprep.subr.bf16.mxu0 0
    %262 = vmatpush1.bf16.msra.mxu0 %v224
    %263 = vmatprep.subr.bf16.mxu0 0
    %264 = vmatpush1.bf16.msra.mxu0 %v225
    %265 = vmatprep.subr.bf16.mxu0 0
    %266 = vmatpush1.bf16.msra.mxu0 %v226
    %267 = vmatprep.subr.bf16.mxu0 0
    %268 = vmatpush1.bf16.msra.mxu0 %v227
    %269 = vmatprep.subr.bf16.mxu0 0
    %270 = vmatpush1.bf16.msra.mxu0 %v228
    %271 = vmatprep.subr.bf16.mxu0 0
    %272 = vmatpush1.bf16.msra.mxu0 %v229
    %273 = vmatprep.subr.bf16.mxu0 0
    %274 = vmatpush1.bf16.msra.mxu0 %v230
    %275 = vmatprep.subr.bf16.mxu0 0
    %276 = vmatpush1.bf16.msra.mxu0 %v231
    %277 = vmatprep.subr.bf16.mxu0 0
    %278 = vmatpush1.bf16.msra.mxu0 %v232
    %279 = vmatprep.subr.bf16.mxu0 0
    %280 = vmatpush1.bf16.msra.mxu0 %v233
    %281 = vmatprep.subr.bf16.mxu0 0
    %282 = vmatpush1.bf16.msra.mxu0 %v234
    %283 = vmatprep.mubr.bf16.mxu0 %v115
    %284 = vmatmul.mubr.bf16.gmra.mrb[0].mxu0 %v114
    %v285 = vpop.f32.mrb[0].mxu0
    %v286 = vadd.f32 %v153, %v285
    %v287 = vpop.f32.mrb[0].mxu0
    %v288 = vpop.f32.mrb[0].mxu0
    %v289 = vadd.f32 %v153, %v288
    %v290 = vpop.f32.mrb[0].mxu0
    %291 = vdwg.mxu0
    %v292 = vmax.f32 %v286, 0.0
    %v293 = vmax.f32 %v289, 0.0
    %v294 = vpack.c.bf16 %v293, %v292
    %v295 = vld [vmem:[#allocation5] sm:$0xff]
    %v296 = vld [vmem:[#allocation5 + $0x8] sm:$0xff]
    %v297 = vld [vmem:[#allocation5 + $0x10] sm:$0xff]
    %v298 = vld [vmem:[#allocation5 + $0x18] sm:$0xff]
    %v299 = vld [vmem:[#allocation5 + $0x20] sm:$0xff]
    %v300 = vld [vmem:[#allocation5 + $0x28] sm:$0xff]
    %v301 = vld [vmem:[#allocation5 + $0x30] sm:$0xff]
    %v302 = vld [vmem:[#allocation5 + $0x38] sm:$0xff]
    %v303 = vld [vmem:[#allocation5 + $0x40] sm:$0xff]
    %v304 = vld [vmem:[#allocation5 + $0x48] sm:$0xff]
    %v305 = vld [vmem:[#allocation5 + $0x50] sm:$0xff]
    %v306 = vld [vmem:[#allocation5 + $0x58] sm:$0xff]
    %v307 = vld [vmem:[#allocation5 + $0x60] sm:$0xff]
    %v308 = vld [vmem:[#allocation5 + $0x68] sm:$0xff]
    %v309 = vld [vmem:[#allocation5 + $0x70] sm:$0xff]
    %v310 = vld [vmem:[#allocation5 + $0x78] sm:$0xff]
    %v327 = vunpack.c.l.b16 %v295
    %v328 = vunpack.c.h.b16 %v295
    %v329 = vunpack.c.l.b16 %v296
    %v330 = vunpack.c.h.b16 %v296
    %v331 = vunpack.c.l.b16 %v297
    %v332 = vunpack.c.h.b16 %v297
    %v333 = vunpack.c.l.b16 %v298
    %v334 = vunpack.c.h.b16 %v298
    %v335 = vunpack.c.l.b16 %v299
    %v336 = vunpack.c.h.b16 %v299
    %v337 = vunpack.c.l.b16 %v300
    %v338 = vunpack.c.h.b16 %v300
    %v339 = vunpack.c.l.b16 %v301
    %v340 = vunpack.c.h.b16 %v301
    %v341 = vunpack.c.l.b16 %v302
    %v342 = vunpack.c.h.b16 %v302
    %v343 = vunpack.c.l.b16 %v303
    %v344 = vunpack.c.h.b16 %v303
    %v345 = vunpack.c.l.b16 %v304
    %v346 = vunpack.c.h.b16 %v304
    %v347 = vunpack.c.l.b16 %v305
    %v348 = vunpack.c.h.b16 %v305
    %v349 = vunpack.c.l.b16 %v306
    %v350 = vunpack.c.h.b16 %v306
    %v351 = vunpack.c.l.b16 %v307
    %v352 = vunpack.c.h.b16 %v307
    %v353 = vunpack.c.l.b16 %v308
    %v354 = vunpack.c.h.b16 %v308
    %v355 = vunpack.c.l.b16 %v309
    %v356 = vunpack.c.h.b16 %v309
    %v357 = vunpack.c.l.b16 %v310
    %v358 = vunpack.c.h.b16 %v310
    %v359 = vpack.c.b16 %v329, %v327
    %v360 = vpack.c.b16 %v330, %v328
    %v361 = vpack.c.b16 %v333, %v331
    %v362 = vpack.c.b16 %v334, %v332
    %v363 = vpack.c.b16 %v337, %v335
    %v364 = vpack.c.b16 %v338, %v336
    %v365 = vpack.c.b16 %v341, %v339
    %v366 = vpack.c.b16 %v342, %v340
    %v367 = vpack.c.b16 %v345, %v343
    %v368 = vpack.c.b16 %v346, %v344
    %v369 = vpack.c.b16 %v349, %v347
    %v370 = vpack.c.b16 %v350, %v348
    %v371 = vpack.c.b16 %v353, %v351
    %v372 = vpack.c.b16 %v354, %v352
    %v373 = vpack.c.b16 %v357, %v355
    %v374 = vpack.c.b16 %v358, %v356
    %391 = vmatprep.subr.bf16.mxu0 %v360
    %392 = vmatpush1.bf16.msra.mxu0 %v359
    %393 = vmatprep.subr.bf16.mxu0 %v362
    %394 = vmatpush1.bf16.msra.mxu0 %v361
    %395 = vmatprep.subr.bf16.mxu0 %v364
    %396 = vmatpush1.bf16.msra.mxu0 %v363
    %397 = vmatprep.subr.bf16.mxu0 %v366
    %398 = vmatpush1.bf16.msra.mxu0 %v365
    %399 = vmatprep.subr.bf16.mxu0 %v368
    %400 = vmatpush1.bf16.msra.mxu0 %v367
    %401 = vmatprep.subr.bf16.mxu0 %v370
    %402 = vmatpush1.bf16.msra.mxu0 %v369
    %403 = vmatprep.subr.bf16.mxu0 %v372
    %404 = vmatpush1.bf16.msra.mxu0 %v371
    %405 = vmatprep.subr.bf16.mxu0 %v374
    %406 = vmatpush1.bf16.msra.mxu0 %v373
    %407 = vmatprep.subr.bf16.mxu0 0
    %408 = vmatpush1.bf16.msra.mxu0 0
    %409 = vmatprep.subr.bf16.mxu0 0
    %410 = vmatpush1.bf16.msra.mxu0 0
    %411 = vmatprep.subr.bf16.mxu0 0
    %412 = vmatpush1.bf16.msra.mxu0 0
    %413 = vmatprep.subr.bf16.mxu0 0
    %414 = vmatpush1.bf16.msra.mxu0 0
    %415 = vmatprep.subr.bf16.mxu0 0
    %416 = vmatpush1.bf16.msra.mxu0 0
    %417 = vmatprep.subr.bf16.mxu0 0
    %418 = vmatpush1.bf16.msra.mxu0 0
    %419 = vmatprep.subr.bf16.mxu0 0
    %420 = vmatpush1.bf16.msra.mxu0 0
    %421 = vmatprep.subr.bf16.mxu0 0
    %422 = vmatpush1.bf16.msra.mxu0 0
    %423 = vmatprep.mubr.bf16.mxu0 0
    %424 = vmatmul.mubr.bf16.gmra.mrb[0].mxu0 %v294
    %v425 = vpop.f32.mrb[0].mxu0
    %v426 = vadd.f32 0.0, %v425
    %v427 = vpop.f32.mrb[0].mxu0
    %v428 = vadd.f32 0.0, %v427
    %v429 = vpop.f32.mrb[0].mxu0
    %v430 = vadd.f32 0.0, %v429
    %v431 = vpop.f32.mrb[0].mxu0
    %v432 = vadd.f32 0.0, %v431
    %433 = vdwg.mxu0
    %v434 = vrot.slane %v426, 4
    %v435 = vadd.f32 %v426, %v434
    %v436 = vrot.slane %v435, 2
    %v437 = vadd.f32 %v435, %v436
    %v438 = vrot.slane %v437, 1
    %v439 = vadd.f32 %v437, %v438
    %v440 = vrot.slane %v428, 4
    %v441 = vadd.f32 %v428, %v440
    %v442 = vrot.slane %v441, 2
    %v443 = vadd.f32 %v441, %v442
    %v444 = vrot.slane %v443, 1
    %v445 = vadd.f32 %v443, %v444
    %v446 = vrot.slane %v430, 4
    %v447 = vadd.f32 %v430, %v446
    %v448 = vrot.slane %v447, 2
    %v449 = vadd.f32 %v447, %v448
    %v450 = vrot.slane %v449, 1
    %v451 = vadd.f32 %v449, %v450
    %v452 = vrot.slane %v432, 4
    %v453 = vadd.f32 %v432, %v452
    %v454 = vrot.slane %v453, 2
    %v455 = vadd.f32 %v453, %v454
    %v456 = vrot.slane %v455, 1
    %v457 = vadd.f32 %v455, %v456
    %v458 = vrcp.pop 8.0
    %v459 = vmul.f32 %v439, %v458
    %v460 = vmul.f32 %v445, %v458
    %v461 = vmul.f32 %v451, %v458
    %v462 = vmul.f32 %v457, %v458
    %v463 = vsub.f32 %v426, %v459
    %v464 = vsub.f32 %v428, %v460
    %v465 = vsub.f32 %v430, %v461
    %v466 = vsub.f32 %v432, %v462
    %v467 = vmul.f32 %v463, %v463
    %v468 = vmul.f32 %v464, %v464
    %v469 = vmul.f32 %v465, %v465
    %v470 = vmul.f32 %v466, %v466
    %v471 = vrot.slane %v467, 4
    %v472 = vadd.f32 %v467, %v471
    %v473 = vrot.slane %v472, 2
    %v474 = vadd.f32 %v472, %v473
    %v475 = vrot.slane %v474, 1
    %v476 = vadd.f32 %v474, %v475
    %v477 = vrot.slane %v468, 4
    %v478 = vadd.f32 %v468, %v477
    %v479 = vrot.slane %v478, 2
    %v480 = vadd.f32 %v478, %v479
    %v481 = vrot.slane %v480, 1
    %v482 = vadd.f32 %v480, %v481
    %v483 = vrot.slane %v469, 4
    %v484 = vadd.f32 %v469, %v483
    %v485 = vrot.slane %v484, 2
    %v486 = vadd.f32 %v484, %v485
    %v487 = vrot.slane %v486, 1
    %v488 = vadd.f32 %v486, %v487
    %v489 = vrot.slane %v470, 4
    %v490 = vadd.f32 %v470, %v489
    %v491 = vrot.slane %v490, 2
    %v492 = vadd.f32 %v490, %v491
    %v493 = vrot.slane %v492, 1
    %v494 = vadd.f32 %v492, %v493
    %v495 = vmul.f32 %v476, %v458
    %v496 = vmul.f32 %v482, %v458
    %v497 = vmul.f32 %v488, %v458
    %v498 = vmul.f32 %v494, %v458
    %v499 = vld [vmem:[%s4] sm:$0x3]
    %v500 = vadd.f32 %v495, 1e-05
    %v501 = vadd.f32 %v496, 1e-05
    %v502 = vadd.f32 %v497, 1e-05
    %v503 = vadd.f32 %v498, 1e-05
    %v504 = vrsqrt.pop %v500
    %v505 = vrsqrt.pop %v501
    %v506 = vrsqrt.pop %v502
    %v507 = vrsqrt.pop %v503
    %v512 = vcombine.low %v504, %v505
    %v514 = vunpack.c.l.s4 1966171168
    %v515 = vunpack.c.0.s8 %v514
    %v516 = vlaneseq
    %v517 = vshrl.u32 %v516, 7
    %v518 = vsub.s32 %v515, %v517
    %v519 = vrot.slane %v512, %v518
    %v521 = vunpack.c.l.s4 1966171168
    %v522 = vunpack.c.0.s8 %v521
    %v523 = vlaneseq
    %v524 = vshrl.u32 %v523, 7
    %v525 = vsub.s32 %v522, %v524
    %v526 = vrot.slane %v519, %v525
    %v527 = vcombine.low %v506, %v507
    %v529 = vunpack.c.l.s4 1966171168
    %v530 = vunpack.c.0.s8 %v529
    %v531 = vlaneseq
    %v532 = vshrl.u32 %v531, 7
    %v533 = vsub.s32 %v530, %v532
    %v534 = vrot.slane %v527, %v533
    %v536 = vunpack.c.l.s4 1966171168
    %v537 = vunpack.c.0.s8 %v536
    %v538 = vlaneseq
    %v539 = vshrl.u32 %v538, 7
    %v540 = vsub.s32 %v537, %v539
    %v541 = vrot.slane %v534, %v540
    %v544 = vmul.f32 %v499, %v526
    %v545 = vmul.f32 %v499, %v541
    %v548 = vlaneseq
    %v549 = vshrl.u32 %v548, 7
    %v550 = vsub.s32 0, %v549
    %v551 = vrot.slane %v544, %v550
    %v552 = vlaneseq
    %v553 = vshrl.u32 %v552, 7
    %v554 = vsub.s32 1, %v553
    %v555 = vrot.slane %v544, %v554
    %v556 = vlaneseq
    %v557 = vshrl.u32 %v556, 7
    %v558 = vsub.s32 0, %v557
    %v559 = vrot.slane %v545, %v558
    %v560 = vlaneseq
    %v561 = vshrl.u32 %v560, 7
    %v562 = vsub.s32 1, %v561
    %v563 = vrot.slane %v545, %v562
    %v568 = vmul.f32 %v463, %v551
    %v569 = vmul.f32 %v464, %v555
    %v570 = vmul.f32 %v465, %v559
    %v571 = vmul.f32 %v466, %v563
    %v572 = vld [vmem:[#allocation7] sm:$0x3]
    %v574 = vlaneseq
    %v575 = vshrl.u32 %v574, 7
    %v576 = vsub.s32 0, %v575
    %v577 = vrot.slane %v572, %v576
    %v578 = vlaneseq
    %v579 = vshrl.u32 %v578, 7
    %v580 = vsub.s32 1, %v579
    %v581 = vrot.slane %v572, %v580
    %v584 = vadd.f32 %v568, %v577
    %v585 = vadd.f32 %v569, %v581
    %v586 = vadd.f32 %v570, %v577
    %v587 = vadd.f32 %v571, %v581
    %v588 = vmax.f32 %v584, 0.0
    %v589 = vmax.f32 %v585, 0.0
    %v590 = vmax.f32 %v586, 0.0
    %v591 = vmax.f32 %v587, 0.0
    %v592 = vpack.c.bf16 %v590, %v588
    %v593 = vpack.c.bf16 %v591, %v589
    %v594 = vld [vmem:[%s6] sm:$0xf]
    %v595 = vld [vmem:[%s6 + $0x4] sm:$0xf]
    %v596 = vld [vmem:[%s6 + $0x8] sm:$0xf]
    %v597 = vld [vmem:[%s6 + $0xc] sm:$0xf]
    %v598 = vld [vmem:[%s6 + $0x10] sm:$0xf]
    %v599 = vld [vmem:[%s6 + $0x14] sm:$0xf]
    %v600 = vld [vmem:[%s6 + $0x18] sm:$0xf]
    %v601 = vld [vmem:[%s6 + $0x1c] sm:$0xf]
    %v602 = vld [vmem:[%s6 + $0x20] sm:$0xf]
    %v603 = vld [vmem:[%s6 + $0x24] sm:$0xf]
    %v604 = vld [vmem:[%s6 + $0x28] sm:$0xf]
    %v605 = vld [vmem:[%s6 + $0x2c] sm:$0xf]
    %v606 = vld [vmem:[%s6 + $0x30] sm:$0xf]
    %v607 = vld [vmem:[%s6 + $0x34] sm:$0xf]
    %v608 = vld [vmem:[%s6 + $0x38] sm:$0xf]
    %v609 = vld [vmem:[%s6 + $0x3c] sm:$0xf]
    %v610 = vld [vmem:[%s6 + $0x40] sm:$0xf]
    %v611 = vld [vmem:[%s6 + $0x44] sm:$0xf]
    %v612 = vld [vmem:[%s6 + $0x48] sm:$0xf]
    %v613 = vld [vmem:[%s6 + $0x4c] sm:$0xf]
    %v614 = vld [vmem:[%s6 + $0x50] sm:$0xf]
    %v615 = vld [vmem:[%s6 + $0x54] sm:$0xf]
    %v616 = vld [vmem:[%s6 + $0x58] sm:$0xf]
    %v617 = vld [vmem:[%s6 + $0x5c] sm:$0xf]
    %v618 = vld [vmem:[%s6 + $0x60] sm:$0xf]
    %v619 = vld [vmem:[%s6 + $0x64] sm:$0xf]
    %v620 = vld [vmem:[%s6 + $0x68] sm:$0xf]
    %v621 = vld [vmem:[%s6 + $0x6c] sm:$0xf]
    %v622 = vld [vmem:[%s6 + $0x70] sm:$0xf]
    %v623 = vld [vmem:[%s6 + $0x74] sm:$0xf]
    %v624 = vld [vmem:[%s6 + $0x78] sm:$0xf]
    %v625 = vld [vmem:[%s6 + $0x7c] sm:$0xf]
    %v626 = vld [vmem:[%s7] sm:$0x1]
    %v628 = vlaneseq
    %v629 = vshrl.u32 %v628, 7
    %v630 = vsub.s32 0, %v629
    %v631 = vrot.slane %v626, %v630
    %v665 = vunpack.c.l.b16 %v594
    %v666 = vunpack.c.l.b16 %v595
    %v667 = vunpack.c.l.b16 %v596
    %v668 = vunpack.c.l.b16 %v597
    %v669 = vunpack.c.l.b16 %v598
    %v670 = vunpack.c.l.b16 %v599
    %v671 = vunpack.c.l.b16 %v600
    %v672 = vunpack.c.l.b16 %v601
    %v673 = vunpack.c.l.b16 %v602
    %v674 = vunpack.c.l.b16 %v603
    %v675 = vunpack.c.l.b16 %v604
    %v676 = vunpack.c.l.b16 %v605
    %v677 = vunpack.c.l.b16 %v606
    %v678 = vunpack.c.l.b16 %v607
    %v679 = vunpack.c.l.b16 %v608
    %v680 = vunpack.c.l.b16 %v609
    %v681 = vunpack.c.l.b16 %v610
    %v682 = vunpack.c.l.b16 %v611
    %v683 = vunpack.c.l.b16 %v612
    %v684 = vunpack.c.l.b16 %v613
    %v685 = vunpack.c.l.b16 %v614
    %v686 = vunpack.c.l.b16 %v615
    %v687 = vunpack.c.l.b16 %v616
    %v688 = vunpack.c.l.b16 %v617
    %v689 = vunpack.c.l.b16 %v618
    %v690 = vunpack.c.l.b16 %v619
    %v691 = vunpack.c.l.b16 %v620
    %v692 = vunpack.c.l.b16 %v621
    %v693 = vunpack.c.l.b16 %v622
    %v694 = vunpack.c.l.b16 %v623
    %v695 = vunpack.c.l.b16 %v624
    %v696 = vunpack.c.l.b16 %v625
    %v697 = vpack.c.b16 %v666, %v665
    %v698 = vpack.c.b16 %v668, %v667
    %v699 = vpack.c.b16 %v670, %v669
    %v700 = vpack.c.b16 %v672, %v671
    %v701 = vpack.c.b16 %v674, %v673
    %v702 = vpack.c.b16 %v676, %v675
    %v703 = vpack.c.b16 %v678, %v677
    %v704 = vpack.c.b16 %v680, %v679
    %v705 = vpack.c.b16 %v682, %v681
    %v706 = vpack.c.b16 %v684, %v683
    %v707 = vpack.c.b16 %v686, %v685
    %v708 = vpack.c.b16 %v688, %v687
    %v709 = vpack.c.b16 %v690, %v689
    %v710 = vpack.c.b16 %v692, %v691
    %v711 = vpack.c.b16 %v694, %v693
    %v712 = vpack.c.b16 %v696, %v695
    %729 = vmatprep.subr.bf16.mxu0 0
    %730 = vmatpush1.bf16.msra.mxu0 %v697
    %731 = vmatprep.subr.bf16.mxu0 0
    %732 = vmatpush1.bf16.msra.mxu0 %v698
    %733 = vmatprep.subr.bf16.mxu0 0
    %734 = vmatpush1.bf16.msra.mxu0 %v699
    %735 = vmatprep.subr.bf16.mxu0 0
    %736 = vmatpush1.bf16.msra.mxu0 %v700
    %737 = vmatprep.subr.bf16.mxu0 0
    %738 = vmatpush1.bf16.msra.mxu0 %v701
    %739 = vmatprep.subr.bf16.mxu0 0
    %740 = vmatpush1.bf16.msra.mxu0 %v702
    %741 = vmatprep.subr.bf16.mxu0 0
    %742 = vmatpush1.bf16.msra.mxu0 %v703
    %743 = vmatprep.subr.bf16.mxu0 0
    %744 = vmatpush1.bf16.msra.mxu0 %v704
    %745 = vmatprep.subr.bf16.mxu0 0
    %746 = vmatpush1.bf16.msra.mxu0 %v705
    %747 = vmatprep.subr.bf16.mxu0 0
    %748 = vmatpush1.bf16.msra.mxu0 %v706
    %749 = vmatprep.subr.bf16.mxu0 0
    %750 = vmatpush1.bf16.msra.mxu0 %v707
    %751 = vmatprep.subr.bf16.mxu0 0
    %752 = vmatpush1.bf16.msra.mxu0 %v708
    %753 = vmatprep.subr.bf16.mxu0 0
    %754 = vmatpush1.bf16.msra.mxu0 %v709
    %755 = vmatprep.subr.bf16.mxu0 0
    %756 = vmatpush1.bf16.msra.mxu0 %v710
    %757 = vmatprep.subr.bf16.mxu0 0
    %758 = vmatpush1.bf16.msra.mxu0 %v711
    %759 = vmatprep.subr.bf16.mxu0 0
    %760 = vmatpush1.bf16.msra.mxu0 %v712
    %761 = vmatprep.mubr.bf16.mxu0 %v593
    %762 = vmatmul.mubr.bf16.gmra.mrb[0].mxu0 %v592
    %v763 = vpop.f32.mrb[0].mxu0
    %v764 = vadd.f32 %v631, %v763
    %v765 = vpop.f32.mrb[0].mxu0
    %v766 = vpop.f32.mrb[0].mxu0
    %v767 = vadd.f32 %v631, %v766
    %v768 = vpop.f32.mrb[0].mxu0
    %769 = vdwg.mxu0
    %v770 = vpack.c.bf16 %v767, %v764
    %v771 = vld [vmem:[#allocation8] sm:$0xff]
    %v772 = vld [vmem:[#allocation8 + $0x8] sm:$0xff]
    %v773 = vld [vmem:[#allocation8 + $0x10] sm:$0xff]
    %v774 = vld [vmem:[#allocation8 + $0x18] sm:$0xff]
    %v775 = vld [vmem:[#allocation8 + $0x20] sm:$0xff]
    %v776 = vld [vmem:[#allocation8 + $0x28] sm:$0xff]
    %v777 = vld [vmem:[#allocation8 + $0x30] sm:$0xff]
    %v778 = vld [vmem:[#allocation8 + $0x38] sm:$0xff]
    %v779 = vld [vmem:[#allocation8 + $0x40] sm:$0xff]
    %v780 = vld [vmem:[#allocation8 + $0x48] sm:$0xff]
    %v781 = vld [vmem:[#allocation8 + $0x50] sm:$0xff]
    %v782 = vld [vmem:[#allocation8 + $0x58] sm:$0xff]
    %v783 = vld [vmem:[#allocation8 + $0x60] sm:$0xff]
    %v784 = vld [vmem:[#allocation8 + $0x68] sm:$0xff]
    %v785 = vld [vmem:[#allocation8 + $0x70] sm:$0xff]
    %v786 = vld [vmem:[#allocation8 + $0x78] sm:$0xff]
    %v803 = vunpack.c.l.b16 %v771
    %v804 = vunpack.c.h.b16 %v771
    %v805 = vunpack.c.l.b16 %v772
    %v806 = vunpack.c.h.b16 %v772
    %v807 = vunpack.c.l.b16 %v773
    %v808 = vunpack.c.h.b16 %v773
    %v809 = vunpack.c.l.b16 %v774
    %v810 = vunpack.c.h.b16 %v774
    %v811 = vunpack.c.l.b16 %v775
    %v812 = vunpack.c.h.b16 %v775
    %v813 = vunpack.c.l.b16 %v776
    %v814 = vunpack.c.h.b16 %v776
    %v815 = vunpack.c.l.b16 %v777
    %v816 = vunpack.c.h.b16 %v777
    %v817 = vunpack.c.l.b16 %v778
    %v818 = vunpack.c.h.b16 %v778
    %v819 = vunpack.c.l.b16 %v779
    %v820 = vunpack.c.h.b16 %v779
    %v821 = vunpack.c.l.b16 %v780
    %v822 = vunpack.c.h.b16 %v780
    %v823 = vunpack.c.l.b16 %v781
    %v824 = vunpack.c.h.b16 %v781
    %v825 = vunpack.c.l.b16 %v782
    %v826 = vunpack.c.h.b16 %v782
    %v827 = vunpack.c.l.b16 %v783
    %v828 = vunpack.c.h.b16 %v783
    %v829 = vunpack.c.l.b16 %v784
    %v830 = vunpack.c.h.b16 %v784
    %v831 = vunpack.c.l.b16 %v785
    %v832 = vunpack.c.h.b16 %v785
    %v833 = vunpack.c.l.b16 %v786
    %v834 = vunpack.c.h.b16 %v786
    %v835 = vpack.c.b16 %v805, %v803
    %v836 = vpack.c.b16 %v806, %v804
    %v837 = vpack.c.b16 %v809, %v807
    %v838 = vpack.c.b16 %v810, %v808
    %v839 = vpack.c.b16 %v813, %v811
    %v840 = vpack.c.b16 %v814, %v812
    %v841 = vpack.c.b16 %v817, %v815
    %v842 = vpack.c.b16 %v818, %v816
    %v843 = vpack.c.b16 %v821, %v819
    %v844 = vpack.c.b16 %v822, %v820
    %v845 = vpack.c.b16 %v825, %v823
    %v846 = vpack.c.b16 %v826, %v824
    %v847 = vpack.c.b16 %v829, %v827
    %v848 = vpack.c.b16 %v830, %v828
    %v849 = vpack.c.b16 %v833, %v831
    %v850 = vpack.c.b16 %v834, %v832
    %867 = vmatprep.subr.bf16.mxu0 %v836
    %868 = vmatpush1.bf16.msra.mxu0 %v835
    %869 = vmatprep.subr.bf16.mxu0 %v838
    %870 = vmatpush1.bf16.msra.mxu0 %v837
    %871 = vmatprep.subr.bf16.mxu0 %v840
    %872 = vmatpush1.bf16.msra.mxu0 %v839
    %873 = vmatprep.subr.bf16.mxu0 %v842
    %874 = vmatpush1.bf16.msra.mxu0 %v841
    %875 = vmatprep.subr.bf16.mxu0 %v844
    %876 = vmatpush1.bf16.msra.mxu0 %v843
    %877 = vmatprep.subr.bf16.mxu0 %v846
    %878 = vmatpush1.bf16.msra.mxu0 %v845
    %879 = vmatprep.subr.bf16.mxu0 %v848
    %880 = vmatpush1.bf16.msra.mxu0 %v847
    %881 = vmatprep.subr.bf16.mxu0 %v850
    %882 = vmatpush1.bf16.msra.mxu0 %v849
    %883 = vmatprep.subr.bf16.mxu0 0
    %884 = vmatpush1.bf16.msra.mxu0 0
    %885 = vmatprep.subr.bf16.mxu0 0
    %886 = vmatpush1.bf16.msra.mxu0 0
    %887 = vmatprep.subr.bf16.mxu0 0
    %888 = vmatpush1.bf16.msra.mxu0 0
    %889 = vmatprep.subr.bf16.mxu0 0
    %890 = vmatpush1.bf16.msra.mxu0 0
    %891 = vmatprep.subr.bf16.mxu0 0
    %892 = vmatpush1.bf16.msra.mxu0 0
    %893 = vmatprep.subr.bf16.mxu0 0
    %894 = vmatpush1.bf16.msra.mxu0 0
    %895 = vmatprep.subr.bf16.mxu0 0
    %896 = vmatpush1.bf16.msra.mxu0 0
    %897 = vmatprep.subr.bf16.mxu0 0
    %898 = vmatpush1.bf16.msra.mxu0 0
    %899 = vmatprep.mubr.bf16.mxu0 0
    %900 = vmatmul.mubr.bf16.gmra.mrb[0].mxu0 %v770
    %v901 = vpop.f32.mrb[0].mxu0
    %v902 = vadd.f32 0.0, %v901
    %v903 = vpop.f32.mrb[0].mxu0
    %v904 = vadd.f32 0.0, %v903
    %v905 = vpop.f32.mrb[0].mxu0
    %v906 = vadd.f32 0.0, %v905
    %v907 = vpop.f32.mrb[0].mxu0
    %v908 = vadd.f32 0.0, %v907
    %909 = vdwg.mxu0
    %v910 = vrot.slane %v902, 4
    %v911 = vadd.f32 %v902, %v910
    %v912 = vrot.slane %v911, 2
    %v913 = vadd.f32 %v911, %v912
    %v914 = vrot.slane %v913, 1
    %v915 = vadd.f32 %v913, %v914
    %v916 = vrot.slane %v904, 4
    %v917 = vadd.f32 %v904, %v916
    %v918 = vrot.slane %v917, 2
    %v919 = vadd.f32 %v917, %v918
    %v920 = vrot.slane %v919, 1
    %v921 = vadd.f32 %v919, %v920
    %v922 = vrot.slane %v906, 4
    %v923 = vadd.f32 %v906, %v922
    %v924 = vrot.slane %v923, 2
    %v925 = vadd.f32 %v923, %v924
    %v926 = vrot.slane %v925, 1
    %v927 = vadd.f32 %v925, %v926
    %v928 = vrot.slane %v908, 4
    %v929 = vadd.f32 %v908, %v928
    %v930 = vrot.slane %v929, 2
    %v931 = vadd.f32 %v929, %v930
    %v932 = vrot.slane %v931, 1
    %v933 = vadd.f32 %v931, %v932
    %v934 = vmul.f32 %v915, %v458
    %v935 = vmul.f32 %v921, %v458
    %v936 = vmul.f32 %v927, %v458
    %v937 = vmul.f32 %v933, %v458
    %v938 = vsub.f32 %v902, %v934
    %v939 = vsub.f32 %v904, %v935
    %v940 = vsub.f32 %v906, %v936
    %v941 = vsub.f32 %v908, %v937
    %v942 = vmul.f32 %v938, %v938
    %v943 = vmul.f32 %v939, %v939
    %v944 = vmul.f32 %v940, %v940
    %v945 = vmul.f32 %v941, %v941
    %v946 = vrot.slane %v942, 4
    %v947 = vadd.f32 %v942, %v946
    %v948 = vrot.slane %v947, 2
    %v949 = vadd.f32 %v947, %v948
    %v950 = vrot.slane %v949, 1
    %v951 = vadd.f32 %v949, %v950
    %v952 = vrot.slane %v943, 4
    %v953 = vadd.f32 %v943, %v952
    %v954 = vrot.slane %v953, 2
    %v955 = vadd.f32 %v953, %v954
    %v956 = vrot.slane %v955, 1
    %v957 = vadd.f32 %v955, %v956
    %v958 = vrot.slane %v944, 4
    %v959 = vadd.f32 %v944, %v958
    %v960 = vrot.slane %v959, 2
    %v961 = vadd.f32 %v959, %v960
    %v962 = vrot.slane %v961, 1
    %v963 = vadd.f32 %v961, %v962
    %v964 = vrot.slane %v945, 4
    %v965 = vadd.f32 %v945, %v964
    %v966 = vrot.slane %v965, 2
    %v967 = vadd.f32 %v965, %v966
    %v968 = vrot.slane %v967, 1
    %v969 = vadd.f32 %v967, %v968
    %v970 = vmul.f32 %v951, %v458
    %v971 = vmul.f32 %v957, %v458
    %v972 = vmul.f32 %v963, %v458
    %v973 = vmul.f32 %v969, %v458
    %v974 = vld [vmem:[%s9] sm:$0x3]
    %v975 = vadd.f32 %v970, 1e-05
    %v976 = vadd.f32 %v971, 1e-05
    %v977 = vadd.f32 %v972, 1e-05
    %v978 = vadd.f32 %v973, 1e-05
    %v979 = vrsqrt.pop %v975
    %v980 = vrsqrt.pop %v976
    %v981 = vrsqrt.pop %v977
    %v982 = vrsqrt.pop %v978
    %v987 = vcombine.low %v979, %v980
    %v989 = vunpack.c.l.s4 1966171168
    %v990 = vunpack.c.0.s8 %v989
    %v991 = vlaneseq
    %v992 = vshrl.u32 %v991, 7
    %v993 = vsub.s32 %v990, %v992
    %v994 = vrot.slane %v987, %v993
    %v996 = vunpack.c.l.s4 1966171168
    %v997 = vunpack.c.0.s8 %v996
    %v998 = vlaneseq
    %v999 = vshrl.u32 %v998, 7
    %v1000 = vsub.s32 %v997, %v999
    %v1001 = vrot.slane %v994, %v1000
    %v1002 = vcombine.low %v981, %v982
    %v1004 = vunpack.c.l.s4 1966171168
    %v1005 = vunpack.c.0.s8 %v1004
    %v1006 = vlaneseq
    %v1007 = vshrl.u32 %v1006, 7
    %v1008 = vsub.s32 %v1005, %v1007
    %v1009 = vrot.slane %v1002, %v1008
    %v1011 = vunpack.c.l.s4 1966171168
    %v1012 = vunpack.c.0.s8 %v1011
    %v1013 = vlaneseq
    %v1014 = vshrl.u32 %v1013, 7
    %v1015 = vsub.s32 %v1012, %v1014
    %v1016 = vrot.slane %v1009, %v1015
    %v1019 = vmul.f32 %v974, %v1001
    %v1020 = vmul.f32 %v974, %v1016
    %v1023 = vlaneseq
    %v1024 = vshrl.u32 %v1023, 7
    %v1025 = vsub.s32 0, %v1024
    %v1026 = vrot.slane %v1019, %v1025
    %v1027 = vlaneseq
    %v1028 = vshrl.u32 %v1027, 7
    %v1029 = vsub.s32 1, %v1028
    %v1030 = vrot.slane %v1019, %v1029
    %v1031 = vlaneseq
    %v1032 = vshrl.u32 %v1031, 7
    %v1033 = vsub.s32 0, %v1032
    %v1034 = vrot.slane %v1020, %v1033
    %v1035 = vlaneseq
    %v1036 = vshrl.u32 %v1035, 7
    %v1037 = vsub.s32 1, %v1036
    %v1038 = vrot.slane %v1020, %v1037
    %v1043 = vmul.f32 %v938, %v1026
    %v1044 = vmul.f32 %v939, %v1030
    %v1045 = vmul.f32 %v940, %v1034
    %v1046 = vmul.f32 %v941, %v1038
    %v1047 = vld [vmem:[%s10] sm:$0x3]
    %v1049 = vlaneseq
    %v1050 = vshrl.u32 %v1049, 7
    %v1051 = vsub.s32 0, %v1050
    %v1052 = vrot.slane %v1047, %v1051
    %v1053 = vlaneseq
    %v1054 = vshrl.u32 %v1053, 7
    %v1055 = vsub.s32 1, %v1054
    %v1056 = vrot.slane %v1047, %v1055
    %v1059 = vadd.f32 %v1043, %v1052
    %v1060 = vadd.f32 %v1044, %v1056
    %v1061 = vadd.f32 %v1045, %v1052
    %v1062 = vadd.f32 %v1046, %v1056
    %v1063 = vmax.f32 %v1059, 0.0
    %v1064 = vmax.f32 %v1060, 0.0
    %v1065 = vmax.f32 %v1061, 0.0
    %v1066 = vmax.f32 %v1062, 0.0
    %v1067 = vpack.c.bf16 %v1065, %v1063
    %v1068 = vpack.c.bf16 %v1066, %v1064
    %v1069 = vld [vmem:[#allocation10] sm:$0xf]
    %v1070 = vld [vmem:[#allocation10 + $0x4] sm:$0xf]
    %v1071 = vld [vmem:[#allocation10 + $0x8] sm:$0xf]
    %v1072 = vld [vmem:[#allocation10 + $0xc] sm:$0xf]
    %v1073 = vld [vmem:[#allocation10 + $0x10] sm:$0xf]
    %v1074 = vld [vmem:[#allocation10 + $0x14] sm:$0xf]
    %v1075 = vld [vmem:[#allocation10 + $0x18] sm:$0xf]
    %v1076 = vld [vmem:[#allocation10 + $0x1c] sm:$0xf]
    %v1077 = vld [vmem:[#allocation10 + $0x20] sm:$0xf]
    %v1078 = vld [vmem:[#allocation10 + $0x24] sm:$0xf]
    %v1079 = vld [vmem:[#allocation10 + $0x28] sm:$0xf]
    %v1080 = vld [vmem:[#allocation10 + $0x2c] sm:$0xf]
    %v1081 = vld [vmem:[#allocation10 + $0x30] sm:$0xf]
    %v1082 = vld [vmem:[#allocation10 + $0x34] sm:$0xf]
    %v1083 = vld [vmem:[#allocation10 + $0x38] sm:$0xf]
    %v1084 = vld [vmem:[#allocation10 + $0x3c] sm:$0xf]
    %v1085 = vld [vmem:[#allocation10 + $0x40] sm:$0xf]
    %v1086 = vld [vmem:[#allocation10 + $0x44] sm:$0xf]
    %v1087 = vld [vmem:[#allocation10 + $0x48] sm:$0xf]
    %v1088 = vld [vmem:[#allocation10 + $0x4c] sm:$0xf]
    %v1089 = vld [vmem:[#allocation10 + $0x50] sm:$0xf]
    %v1090 = vld [vmem:[#allocation10 + $0x54] sm:$0xf]
    %v1091 = vld [vmem:[#allocation10 + $0x58] sm:$0xf]
    %v1092 = vld [vmem:[#allocation10 + $0x5c] sm:$0xf]
    %v1093 = vld [vmem:[#allocation10 + $0x60] sm:$0xf]
    %v1094 = vld [vmem:[#allocation10 + $0x64] sm:$0xf]
    %v1095 = vld [vmem:[#allocation10 + $0x68] sm:$0xf]
    %v1096 = vld [vmem:[#allocation10 + $0x6c] sm:$0xf]
    %v1097 = vld [vmem:[#allocation10 + $0x70] sm:$0xf]
    %v1098 = vld [vmem:[#allocation10 + $0x74] sm:$0xf]
    %v1099 = vld [vmem:[#allocation10 + $0x78] sm:$0xf]
    %v1100 = vld [vmem:[#allocation10 + $0x7c] sm:$0xf]
    %v1101 = vld [vmem:[%s12] sm:$0x1]
    %v1103 = vlaneseq
    %v1104 = vshrl.u32 %v1103, 7
    %v1105 = vsub.s32 0, %v1104
    %v1106 = vrot.slane %v1101, %v1105
    %v1140 = vunpack.c.l.b16 %v1069
    %v1141 = vunpack.c.l.b16 %v1070
    %v1142 = vunpack.c.l.b16 %v1071
    %v1143 = vunpack.c.l.b16 %v1072
    %v1144 = vunpack.c.l.b16 %v1073
    %v1145 = vunpack.c.l.b16 %v1074
    %v1146 = vunpack.c.l.b16 %v1075
    %v1147 = vunpack.c.l.b16 %v1076
    %v1148 = vunpack.c.l.b16 %v1077
    %v1149 = vunpack.c.l.b16 %v1078
    %v1150 = vunpack.c.l.b16 %v1079
    %v1151 = vunpack.c.l.b16 %v1080
    %v1152 = vunpack.c.l.b16 %v1081
    %v1153 = vunpack.c.l.b16 %v1082
    %v1154 = vunpack.c.l.b16 %v1083
    %v1155 = vunpack.c.l.b16 %v1084
    %v1156 = vunpack.c.l.b16 %v1085
    %v1157 = vunpack.c.l.b16 %v1086
    %v1158 = vunpack.c.l.b16 %v1087
    %v1159 = vunpack.c.l.b16 %v1088
    %v1160 = vunpack.c.l.b16 %v1089
    %v1161 = vunpack.c.l.b16 %v1090
    %v1162 = vunpack.c.l.b16 %v1091
    %v1163 = vunpack.c.l.b16 %v1092
    %v1164 = vunpack.c.l.b16 %v1093
    %v1165 = vunpack.c.l.b16 %v1094
    %v1166 = vunpack.c.l.b16 %v1095
    %v1167 = vunpack.c.l.b16 %v1096
    %v1168 = vunpack.c.l.b16 %v1097
    %v1169 = vunpack.c.l.b16 %v1098
    %v1170 = vunpack.c.l.b16 %v1099
    %v1171 = vunpack.c.l.b16 %v1100
    %v1172 = vpack.c.b16 %v1141, %v1140
    %v1173 = vpack.c.b16 %v1143, %v1142
    %v1174 = vpack.c.b16 %v1145, %v1144
    %v1175 = vpack.c.b16 %v1147, %v1146
    %v1176 = vpack.c.b16 %v1149, %v1148
    %v1177 = vpack.c.b16 %v1151, %v1150
    %v1178 = vpack.c.b16 %v1153, %v1152
    %v1179 = vpack.c.b16 %v1155, %v1154
    %v1180 = vpack.c.b16 %v1157, %v1156
    %v1181 = vpack.c.b16 %v1159, %v1158
    %v1182 = vpack.c.b16 %v1161, %v1160
    %v1183 = vpack.c.b16 %v1163, %v1162
    %v1184 = vpack.c.b16 %v1165, %v1164
    %v1185 = vpack.c.b16 %v1167, %v1166
    %v1186 = vpack.c.b16 %v1169, %v1168
    %v1187 = vpack.c.b16 %v1171, %v1170
    %1204 = vmatprep.subr.bf16.mxu0 0
    %1205 = vmatpush1.bf16.msra.mxu0 %v1172
    %1206 = vmatprep.subr.bf16.mxu0 0
    %1207 = vmatpush1.bf16.msra.mxu0 %v1173
    %1208 = vmatprep.subr.bf16.mxu0 0
    %1209 = vmatpush1.bf16.msra.mxu0 %v1174
    %1210 = vmatprep.subr.bf16.mxu0 0
    %1211 = vmatpush1.bf16.msra.mxu0 %v1175
    %1212 = vmatprep.subr.bf16.mxu0 0
    %1213 = vmatpush1.bf16.msra.mxu0 %v1176
    %1214 = vmatprep.subr.bf16.mxu0 0
    %1215 = vmatpush1.bf16.msra.mxu0 %v1177
    %1216 = vmatprep.subr.bf16.mxu0 0
    %1217 = vmatpush1.bf16.msra.mxu0 %v1178
    %1218 = vmatprep.subr.bf16.mxu0 0
    %1219 = vmatpush1.bf16.msra.mxu0 %v1179
    %1220 = vmatprep.subr.bf16.mxu0 0
    %1221 = vmatpush1.bf16.msra.mxu0 %v1180
    %1222 = vmatprep.subr.bf16.mxu0 0
    %1223 = vmatpush1.bf16.msra.mxu0 %v1181
    %1224 = vmatprep.subr.bf16.mxu0 0
    %1225 = vmatpush1.bf16.msra.mxu0 %v1182
    %1226 = vmatprep.subr.bf16.mxu0 0
    %1227 = vmatpush1.bf16.msra.mxu0 %v1183
    %1228 = vmatprep.subr.bf16.mxu0 0
    %1229 = vmatpush1.bf16.msra.mxu0 %v1184
    %1230 = vmatprep.subr.bf16.mxu0 0
    %1231 = vmatpush1.bf16.msra.mxu0 %v1185
    %1232 = vmatprep.subr.bf16.mxu0 0
    %1233 = vmatpush1.bf16.msra.mxu0 %v1186
    %1234 = vmatprep.subr.bf16.mxu0 0
    %1235 = vmatpush1.bf16.msra.mxu0 %v1187
    %1236 = vmatprep.mubr.bf16.mxu0 %v1068
    %1237 = vmatmul.mubr.bf16.gmra.mrb[0].mxu0 %v1067
    %v1238 = vpop.f32.mrb[0].mxu0
    %v1239 = vadd.f32 %v1106, %v1238
    %v1240 = vpop.f32.mrb[0].mxu0
    %v1241 = vpop.f32.mrb[0].mxu0
    %v1242 = vadd.f32 %v1106, %v1241
    %v1243 = vpop.f32.mrb[0].mxu0
    %1244 = vdwg.mxu0
    %v1245 = vmul.f32 %v1239, %v1239
    %v1246 = vmul.f32 %v1242, %v1242
    %1247 = vadd.xlane.f32.xlu0 %v1245
    %v1248 = vpop.xlane.xlu0 %1247
    %1249 = vadd.xlane.f32.xlu0 %v1246
    %v1250 = vpop.xlane.xlu0 %1249
    %v1251 = vmax.f32 %v1248, 1e-24
    %v1252 = vmax.f32 %v1250, 1e-24
    %v1253 = vrsqrt.pop %v1251
    %v1254 = vrsqrt.pop %v1252
    %v1255 = vmul.f32 %v1239, %v1253
    %v1256 = vmul.f32 %v1242, %v1254
    %v1257 = vmul.f32 %v764, %v764
    %v1258 = vmul.f32 %v767, %v767
    %1259 = vadd.xlane.f32.xlu0 %v1257
    %v1260 = vpop.xlane.xlu0 %1259
    %1261 = vadd.xlane.f32.xlu0 %v1258
    %v1262 = vpop.xlane.xlu0 %1261
    %v1263 = vmax.f32 %v1260, 1e-24
    %v1264 = vmax.f32 %v1262, 1e-24
    %v1265 = vrsqrt.pop %v1263
    %v1266 = vrsqrt.pop %v1264
    %v1267 = vmul.f32 %v764, %v1265
    %v1268 = vmul.f32 %v767, %v1266
    %v1269 = vmul.f32 %v1255, %v1268
    %v1270 = vmul.f32 %v1256, %v1267
    %v1271 = vadd.f32 %v1269, %v1270
    %1272 = vadd.xlane.f32.xlu0 %v1271
    %v1273 = vpop.xlane.xlu0 %1272
    %v1274 = vmul.f32 %v1273, 2.0
    %v1275 = vsub.f32 4.0, %v1274
    %vm1276 = vcmask 7168
    %v1277 = vsel %vm1276, %v1275, 0.0
    %1278 = vadd.xlane.f32.xlu0 %v1277
    %v1279 = vpop.xlane.xlu0 %1278
    %v1280 = vrot.slane %v1279, 4
    %v1281 = vadd.f32 %v1279, %v1280
    %v1282 = vrot.slane %v1281, 2
    %v1283 = vadd.f32 %v1281, %v1282
    %v1284 = vrot.slane %v1283, 1
    %v1285 = vadd.f32 %v1283, %v1284
    %s1286 = vtos %v1285
    %v1287 = vrcp.pop 8.0
    %s1288 = vtos %v1287
    %s1289 = smul.f32 %s1286, %s1288
    %s1290 = scalar_lea.smem [#allocation11], 0
    %1291 = sst [smem:[%s1290]] %s1289
    // Predicated region
    $region74: #{simsam_forward.1} parent=1 // pred_check
      _
    $region75: #{simsam_forward.1} parent=1 // pred_check_branch
      %1293 = sbr.rel (0) target = $region77
    $region76: #{simsam_forward.1} parent=1 // pred_region
      %s1295 = ssub.s32 16, 16
      %1296 = vsyncadd [#allocation4], %s1295
      %1299 = dma.smem_to_hbm [#allocation11], 16, %s13, [#allocation4]
    $region77: #{simsam_forward.1} parent=1 // pred_fallthru
      _
    // Predicated region
    $region78: #{simsam_forward.1} parent=1 // pred_check
      _
    $region79: #{simsam_forward.1} parent=1 // pred_check_branch
      %1301 = sbr.rel (0) target = $region81
    $region80: #{simsam_forward.1} parent=1 // pred_region
      %1302 = dma.done [#allocation4], 16
    $region81: #{simsam_forward.1} parent=1 // pred_fallthru
      _
    %1303 = sfence
    %1304 = vsyncpa [#allocation3], 1
    %1305 = vsyncpa [#allocation6], 1
    %1306 = vsyncpa [#allocation9], 1
    %1307 = vsyncpa [#allocation4], 1

</llo_original>
